<compile_context>
chip_gen: v6e
topology: v6e:2x2x1
jax: 0.10.0
libtpu: 0.0.40
codegen_flags: <defaults>
</compile_context>

<pallas_src>
import jax
import jax.numpy as jnp
from jax.experimental import pallas as pl
from jax.experimental.pallas import tpu as pltpu

LANE = 128          # lane width (last dim)
SUBLANE_BF16 = 16   # bf16 sublane packing (second-to-last dim)


def _round_up(n, m):
    return ((n + m - 1) // m) * m


def _pad_to(a, target_shape):
    pads = [(0, t - s) for s, t in zip(a.shape, target_shape)]
    return jnp.pad(a, pads)


def _make_kernel(n_hidden):
    """Build a fused-MLP kernel body for a static number of hidden layers."""
    bf16 = jnp.bfloat16
    if n_hidden > 0:
        def kernel(x_ref, w_in_ref, b_in_ref, w_hid_ref, b_hid_ref,
                   w_out_ref, b_out_ref, o_ref):
            # Input layer + ReLU (bf16 operands, f32 MXU accumulation).
            h = jnp.dot(x_ref[...], w_in_ref[...],
                        preferred_element_type=jnp.float32)
            h = jnp.maximum(h + b_in_ref[...], 0.0)
            # Hidden layers + ReLU. n_hidden is static and small -> unrolled.
            for i in range(n_hidden):
                h = jnp.dot(h.astype(bf16), w_hid_ref[i],
                            preferred_element_type=jnp.float32)
                h = jnp.maximum(h + b_hid_ref[i], 0.0)
            # Output layer (no activation). Lane-dense (TB, OUT_P) f32 store.
            out = jnp.dot(h.astype(bf16), w_out_ref[...],
                          preferred_element_type=jnp.float32)
            o_ref[...] = out + b_out_ref[...]
    else:
        def kernel(x_ref, w_in_ref, b_in_ref, w_out_ref, b_out_ref, o_ref):
            h = jnp.dot(x_ref[...], w_in_ref[...],
                        preferred_element_type=jnp.float32)
            h = jnp.maximum(h + b_in_ref[...], 0.0)
            out = jnp.dot(h.astype(bf16), w_out_ref[...],
                          preferred_element_type=jnp.float32)
            o_ref[...] = out + b_out_ref[...]
    return kernel


def deep_q_net_forward(x, params, *, batch_tile=256):
    """Fused MLP forward.

    Weights stay VMEM-resident (single-buffered, constant index_map) across a
    1-D "parallel" grid over batch tiles.  Hidden/output feature dims are
    zero-padded to the 128-lane width; the input feature dim and the batch dim
    are left unpadded (ragged last batch block handled by Pallas).
    """
    w_in, b_in, w_hid, b_hid, w_out, b_out = params
    B, in_size = x.shape
    hid_size = w_in.shape[1]
    out_size = w_out.shape[1]
    n_hidden = 0 if w_hid is None else int(w_hid.shape[0])

    f32 = jnp.float32
    bf16 = jnp.bfloat16

    # Hardware-aligned hidden/output feature sizes (lane axis).
    hid_p = _round_up(hid_size, LANE)
    out_p = _round_up(out_size, LANE)

    # Batch tile: multiple of 16 (bf16 sublane), clamped so a tiny batch does
    # not burn a huge mostly-empty tile.  This is the main sweep knob.
    tb = _round_up(max(batch_tile, SUBLANE_BF16), SUBLANE_BF16)
    tb = min(tb, _round_up(B, SUBLANE_BF16))
    grid = (pl.cdiv(B, tb),)

    # bf16 operands for the MXU; biases stay f32 (added to the f32 acc).
    x_bf = x.astype(bf16)
    w_in_p = _pad_to(w_in.astype(bf16), (in_size, hid_p))
    b_in_p = _pad_to(b_in.astype(f32), (1, hid_p))
    w_out_p = _pad_to(w_out.astype(bf16), (hid_p, out_p))
    b_out_p = _pad_to(b_out.astype(f32), (1, out_p))

    # VMEM budget (bytes): resident weights + biases, double-buffered x/out
    # tiles, and a few live f32 h intermediates inside the unrolled chain.
    weight_vmem = 2 * (in_size * hid_p + n_hidden * hid_p * hid_p + hid_p * out_p)
    bias_vmem = 4 * ((1 + n_hidden) * hid_p + out_p)
    act_vmem = 2 * (2 * tb * in_size) + 2 * (4 * tb * out_p) + 3 * (4 * tb * hid_p)
    vmem_needed = weight_vmem + bias_vmem + act_vmem
    if vmem_needed > 44 * 1024 * 1024:
        # TODO(synk): for very large hidden_size/hidden_number, tile the
        # hidden/output feature dims as a second 'arbitrary' grid axis with a
        # VMEM accumulator instead of holding every layer resident (needed for
        # v7x's 64 MiB-per-TensorCore VMEM).
        raise ValueError(
            f"Resident-weight plan needs ~{vmem_needed >> 20} MiB VMEM; "
            "reduce hidden_size/hidden_number or add feature-dim tiling.")
    vmem_limit = int(min(60 << 20, max(int(vmem_needed * 1.5) + (2 << 20),
                                       16 << 20)))

    resident = dict(pipeline_mode=pl.Buffered(1))  # constant-index blocks

    # x / out: tiled over batch.  Weights/biases: full array, block index 0
    # every grid step -> resident in VMEM, single-buffered.
    x_spec = pl.BlockSpec((tb, in_size), lambda i: (i, 0))
    out_spec = pl.BlockSpec((tb, out_p), lambda i: (i, 0))

    inputs = [x_bf, w_in_p, b_in_p]
    in_specs = [
        x_spec,
        pl.BlockSpec((in_size, hid_p), lambda i: (0, 0), **resident),
        pl.BlockSpec((1, hid_p), lambda i: (0, 0), **resident),
    ]

    if n_hidden > 0:
        w_hid_p = jnp.pad(
            w_hid.astype(bf16),
            ((0, 0), (0, hid_p - hid_size), (0, hid_p - hid_size)))
        b_hid_p = jnp.pad(
            b_hid.astype(f32),
            ((0, 0), (0, 0), (0, hid_p - hid_size)))
        inputs += [w_hid_p, b_hid_p]
        in_specs += [
            pl.BlockSpec((n_hidden, hid_p, hid_p), lambda i: (0, 0, 0),
                         **resident),
            pl.BlockSpec((n_hidden, 1, hid_p), lambda i: (0, 0, 0),
                         **resident),
        ]

    inputs += [w_out_p, b_out_p]
    in_specs += [
        pl.BlockSpec((hid_p, out_p), lambda i: (0, 0), **resident),
        pl.BlockSpec((1, out_p), lambda i: (0, 0), **resident),
    ]

    flops = 2 * B * (in_size * hid_size
                     + n_hidden * hid_size * hid_size
                     + hid_size * out_size)
    bytes_accessed = (B * in_size * 2          # x (bf16)
                      + weight_vmem + bias_vmem
                      + B * out_p * 4)         # output (f32)
    cost = pl.CostEstimate(flops=int(flops), transcendentals=0,
                           bytes_accessed=int(bytes_accessed))

    out_padded = pl.pallas_call(
        _make_kernel(n_hidden),
        out_shape=jax.ShapeDtypeStruct((B, out_p), jnp.float32),
        grid=grid,
        in_specs=in_specs,
        out_specs=out_spec,
        compiler_params=pltpu.CompilerParams(
            dimension_semantics=("parallel",),
            vmem_limit_bytes=vmem_limit),
        cost_estimate=cost,
    )(*inputs)

    # Slice the lane-padded output back to the logical (B, output_size).
    return out_padded[:, :out_size]


def init_params(key, input_size, hidden_size, hidden_number, output_size):
    """Deterministic synthetic init mimicking nn.Linear's uniform(-1/sqrt(fan_in))."""
    n_hidden = hidden_number - 1
    keys = jax.random.split(key, 6)

    def uni(k, shape, fan_in):
        bound = 1.0 / jnp.sqrt(jnp.float32(fan_in))
        return jax.random.uniform(k, shape, jnp.float32, -bound, bound)

    # Weights stored already-transposed: (in_features, out_features).
    w_in = uni(keys[0], (input_size, hidden_size), input_size)
    b_in = uni(keys[1], (1, hidden_size), input_size)
    if n_hidden > 0:
        w_hid = uni(keys[2], (n_hidden, hidden_size, hidden_size), hidden_size)
        b_hid = uni(keys[3], (n_hidden, 1, hidden_size), hidden_size)
    else:
        w_hid = None
        b_hid = None
    w_out = uni(keys[4], (hidden_size, output_size), hidden_size)
    b_out = uni(keys[5], (1, output_size), hidden_size)
    return (w_in, b_in, w_hid, b_hid, w_out, b_out)


def reference_forward(x, params):
    w_in, b_in, w_hid, b_hid, w_out, b_out = params
    h = jax.nn.relu(x @ w_in + b_in)
    if w_hid is not None:
        for i in range(w_hid.shape[0]):
            h = jax.nn.relu(h @ w_hid[i] + b_hid[i])
    return h @ w_out + b_out


if __name__ == "__main__":
    # Shapes implied by the module: x is (batch, input_size).
    batch = 2
    input_size = 16
    hidden_size = 32
    hidden_number = 3   # -> input layer + 2 hidden layers + output layer
    output_size = 4

    key = jax.random.PRNGKey(0)
    k_x, k_p = jax.random.split(key)
    x = jax.random.normal(k_x, (batch, input_size), dtype=jnp.float32)
    params = init_params(k_p, input_size, hidden_size, hidden_number, output_size)

    out = deep_q_net_forward(x, params)
    out = jax.block_until_ready(out)

    ref = reference_forward(x, params)
    assert out.shape == (batch, output_size)
    # bf16 MXU operands (f32 accumulation) -> loosened tolerance vs f32 ref.
    assert jnp.allclose(out, ref, atol=5e-2, rtol=5e-2), "mismatch vs reference"

    print("KERNEL_OK")
</pallas_src>

<mosaic_0001>
module attributes {stable_mosaic.version = 11 : i64} {
  func.func @kernel(%arg0: i32, %arg1: memref<16x16xbf16, #tpu.memory_space<vmem>>, %arg2: memref<16x128xbf16, #tpu.memory_space<vmem>>, %arg3: memref<1x128xf32, #tpu.memory_space<vmem>>, %arg4: memref<2x128x128xbf16, #tpu.memory_space<vmem>>, %arg5: memref<2x1x128xf32, #tpu.memory_space<vmem>>, %arg6: memref<128x128xbf16, #tpu.memory_space<vmem>>, %arg7: memref<1x128xf32, #tpu.memory_space<vmem>>, %arg8: memref<16x128xf32, #tpu.memory_space<vmem>>) attributes {dimension_semantics = [#tpu.dimension_semantics<parallel>], iteration_bounds = array<i64: 1>, scalar_prefetch = 0 : i64, scratch_operands = 0 : i64, tpu.core_type = #tpu.core_type<tc>, window_params = [{transform_indices = @transform_0, window_bounds = array<i64: 16, 16>}, {pipeline_mode = #tpu.pipeline_mode<synchronous>, transform_indices = @transform_1, window_bounds = array<i64: 16, 128>}, {pipeline_mode = #tpu.pipeline_mode<synchronous>, transform_indices = @transform_2, window_bounds = array<i64: 1, 128>}, {pipeline_mode = #tpu.pipeline_mode<synchronous>, transform_indices = @transform_3, window_bounds = array<i64: 2, 128, 128>}, {pipeline_mode = #tpu.pipeline_mode<synchronous>, transform_indices = @transform_4, window_bounds = array<i64: 2, 1, 128>}, {pipeline_mode = #tpu.pipeline_mode<synchronous>, transform_indices = @transform_5, window_bounds = array<i64: 128, 128>}, {pipeline_mode = #tpu.pipeline_mode<synchronous>, transform_indices = @transform_6, window_bounds = array<i64: 1, 128>}, {transform_indices = @transform_7, window_bounds = array<i64: 16, 128>}]} {
    %c0 = arith.constant 0 : index
    %c0_0 = arith.constant 0 : index
    %0 = vector.load %arg1[%c0, %c0_0] : memref<16x16xbf16, #tpu.memory_space<vmem>>, vector<16x16xbf16>
    %c0_1 = arith.constant 0 : index
    %c0_2 = arith.constant 0 : index
    %1 = vector.load %arg2[%c0_1, %c0_2] : memref<16x128xbf16, #tpu.memory_space<vmem>>, vector<16x128xbf16>
    %cst = arith.constant dense<0.000000e+00> : vector<16x128xf32>
    %2 = tpu.matmul %0, %1, %cst {dimension_numbers = #tpu.dot_dimension_numbers<[1], [0], [0], [1], [0, 0, 1, 1], [], []>} : vector<16x16xbf16>, vector<16x128xbf16>, vector<16x128xf32> -> vector<16x128xf32>
    %c0_3 = arith.constant 0 : index
    %c0_4 = arith.constant 0 : index
    %3 = vector.load %arg3[%c0_3, %c0_4] : memref<1x128xf32, #tpu.memory_space<vmem>>, vector<1x128xf32>
    %4 = vector.broadcast %3 : vector<1x128xf32> to vector<16x128xf32>
    %5 = arith.addf %2, %4 : vector<16x128xf32>
    %cst_5 = arith.constant 0.000000e+00 : f32
    %6 = vector.broadcast %cst_5 : f32 to vector<16x128xf32>
    %7 = arith.maximumf %5, %6 : vector<16x128xf32>
    %8 = arith.truncf %7 : vector<16x128xf32> to vector<16x128xbf16>
    %c0_6 = arith.constant 0 : index
    %c0_7 = arith.constant 0 : index
    %c0_8 = arith.constant 0 : index
    %9 = vector.load %arg4[%c0_6, %c0_7, %c0_8] : memref<2x128x128xbf16, #tpu.memory_space<vmem>>, vector<1x128x128xbf16>
    %10 = vector.shape_cast %9 : vector<1x128x128xbf16> to vector<128x128xbf16>
    %cst_9 = arith.constant dense<0.000000e+00> : vector<16x128xf32>
    %11 = tpu.matmul %8, %10, %cst_9 {dimension_numbers = #tpu.dot_dimension_numbers<[1], [0], [0], [1], [0, 0, 1, 1], [], []>} : vector<16x128xbf16>, vector<128x128xbf16>, vector<16x128xf32> -> vector<16x128xf32>
    %c0_10 = arith.constant 0 : index
    %c0_11 = arith.constant 0 : index
    %c0_12 = arith.constant 0 : index
    %12 = vector.load %arg5[%c0_10, %c0_11, %c0_12] : memref<2x1x128xf32, #tpu.memory_space<vmem>>, vector<1x1x128xf32>
    %13 = vector.shape_cast %12 : vector<1x1x128xf32> to vector<1x128xf32>
    %14 = vector.broadcast %13 : vector<1x128xf32> to vector<16x128xf32>
    %15 = arith.addf %11, %14 : vector<16x128xf32>
    %cst_13 = arith.constant 0.000000e+00 : f32
    %16 = vector.broadcast %cst_13 : f32 to vector<16x128xf32>
    %17 = arith.maximumf %15, %16 : vector<16x128xf32>
    %18 = arith.truncf %17 : vector<16x128xf32> to vector<16x128xbf16>
    %c1 = arith.constant 1 : index
    %c0_14 = arith.constant 0 : index
    %c0_15 = arith.constant 0 : index
    %19 = vector.load %arg4[%c1, %c0_14, %c0_15] : memref<2x128x128xbf16, #tpu.memory_space<vmem>>, vector<1x128x128xbf16>
    %20 = vector.shape_cast %19 : vector<1x128x128xbf16> to vector<128x128xbf16>
    %cst_16 = arith.constant dense<0.000000e+00> : vector<16x128xf32>
    %21 = tpu.matmul %18, %20, %cst_16 {dimension_numbers = #tpu.dot_dimension_numbers<[1], [0], [0], [1], [0, 0, 1, 1], [], []>} : vector<16x128xbf16>, vector<128x128xbf16>, vector<16x128xf32> -> vector<16x128xf32>
    %c1_17 = arith.constant 1 : index
    %c0_18 = arith.constant 0 : index
    %c0_19 = arith.constant 0 : index
    %22 = vector.load %arg5[%c1_17, %c0_18, %c0_19] : memref<2x1x128xf32, #tpu.memory_space<vmem>>, vector<1x1x128xf32>
    %23 = vector.shape_cast %22 : vector<1x1x128xf32> to vector<1x128xf32>
    %24 = vector.broadcast %23 : vector<1x128xf32> to vector<16x128xf32>
    %25 = arith.addf %21, %24 : vector<16x128xf32>
    %cst_20 = arith.constant 0.000000e+00 : f32
    %26 = vector.broadcast %cst_20 : f32 to vector<16x128xf32>
    %27 = arith.maximumf %25, %26 : vector<16x128xf32>
    %28 = arith.truncf %27 : vector<16x128xf32> to vector<16x128xbf16>
    %c0_21 = arith.constant 0 : index
    %c0_22 = arith.constant 0 : index
    %29 = vector.load %arg6[%c0_21, %c0_22] : memref<128x128xbf16, #tpu.memory_space<vmem>>, vector<128x128xbf16>
    %cst_23 = arith.constant dense<0.000000e+00> : vector<16x128xf32>
    %30 = tpu.matmul %28, %29, %cst_23 {dimension_numbers = #tpu.dot_dimension_numbers<[1], [0], [0], [1], [0, 0, 1, 1], [], []>} : vector<16x128xbf16>, vector<128x128xbf16>, vector<16x128xf32> -> vector<16x128xf32>
    %c0_24 = arith.constant 0 : index
    %c0_25 = arith.constant 0 : index
    %31 = vector.load %arg7[%c0_24, %c0_25] : memref<1x128xf32, #tpu.memory_space<vmem>>, vector<1x128xf32>
    %32 = vector.broadcast %31 : vector<1x128xf32> to vector<16x128xf32>
    %33 = arith.addf %30, %32 : vector<16x128xf32>
    %c0_26 = arith.constant 0 : index
    %c0_27 = arith.constant 0 : index
    %34 = vector.load %arg8[%c0_26, %c0_27] : memref<16x128xf32, #tpu.memory_space<vmem>>, vector<16x128xf32>
    tpu.vector_store %arg8[%c0_26, %c0_27], %33 {strides = array<i32>} : memref<16x128xf32, #tpu.memory_space<vmem>>, vector<16x128xf32>,
    return
  }
  func.func @transform_0(%arg0: i32) -> (i32, i32) {
    %c0_i32 = arith.constant 0 : i32
    %c0_i32_0 = arith.constant 0 : i32
    return %arg0, %c0_i32 : i32, i32
  }
  func.func @transform_1(%arg0: i32) -> (i32, i32) {
    %c0_i32 = arith.constant 0 : i32
    %c0_i32_0 = arith.constant 0 : i32
    %c0_i32_1 = arith.constant 0 : i32
    return %c0_i32, %c0_i32_0 : i32, i32
  }
  func.func @transform_2(%arg0: i32) -> (i32, i32) {
    %c0_i32 = arith.constant 0 : i32
    %c0_i32_0 = arith.constant 0 : i32
    %c0_i32_1 = arith.constant 0 : i32
    return %c0_i32, %c0_i32_0 : i32, i32
  }
  func.func @transform_3(%arg0: i32) -> (i32, i32, i32) {
    %c0_i32 = arith.constant 0 : i32
    %c0_i32_0 = arith.constant 0 : i32
    %c0_i32_1 = arith.constant 0 : i32
    %c0_i32_2 = arith.constant 0 : i32
    return %c0_i32, %c0_i32_0, %c0_i32_1 : i32, i32, i32
  }
  func.func @transform_4(%arg0: i32) -> (i32, i32, i32) {
    %c0_i32 = arith.constant 0 : i32
    %c0_i32_0 = arith.constant 0 : i32
    %c0_i32_1 = arith.constant 0 : i32
    %c0_i32_2 = arith.constant 0 : i32
    return %c0_i32, %c0_i32_0, %c0_i32_1 : i32, i32, i32
  }
  func.func @transform_5(%arg0: i32) -> (i32, i32) {
    %c0_i32 = arith.constant 0 : i32
    %c0_i32_0 = arith.constant 0 : i32
    %c0_i32_1 = arith.constant 0 : i32
    return %c0_i32, %c0_i32_0 : i32, i32
  }
  func.func @transform_6(%arg0: i32) -> (i32, i32) {
    %c0_i32 = arith.constant 0 : i32
    %c0_i32_0 = arith.constant 0 : i32
    %c0_i32_1 = arith.constant 0 : i32
    return %c0_i32, %c0_i32_0 : i32, i32
  }
  func.func @transform_7(%arg0: i32) -> (i32, i32) {
    %c0_i32 = arith.constant 0 : i32
    %c0_i32_0 = arith.constant 0 : i32
    return %arg0, %c0_i32 : i32, i32
  }
}

</mosaic_0001>

<llo_original>
// kernel: tpu_custom_call.1
$region0: #{tpu_custom_call.1}
  #allocation0 [shape = 'u32[]', space=smem, size = 0x4, offset = 0x4, fixed_abs, tag = 'smem constant byte address 0x4 - core index']
  #allocation1 [shape = 'u32[144,128]{1,0:T(1,128)}', space=vmem, size = 0x12000, scoped, tag = 'internal scratch']
  %s0 = inlined_call_operand.hbm [shape: bf16[2,16], index: 0, kind: input, shape index: {}]
  %s1 = inlined_call_operand.hbm [shape: bf16[16,128], index: 1, kind: input, shape index: {}]
  %s2 = inlined_call_operand.vmem [shape: f32[1,128], index: 2, kind: input, shape index: {}]
  %s3 = inlined_call_operand.hbm [shape: bf16[2,128,128], index: 3, kind: input, shape index: {}]
  %s4 = inlined_call_operand.vmem [shape: f32[2,1,128], index: 4, kind: input, shape index: {}]
  %s5 = inlined_call_operand.hbm [shape: bf16[128,128], index: 5, kind: input, shape index: {}]
  %s6 = inlined_call_operand.vmem [shape: f32[1,128], index: 6, kind: input, shape index: {}]
  %s7 = inlined_call_operand.hbm [shape: f32[2,128], index: 7, kind: output, shape index: {}]
  %s8 = sld [smem:[#allocation0]]
  $region54: #{tpu_custom_call.1} parent=0
    _
  %s10 = ssub.s32 1, %s8
  %s11 = scalar_select 0, %s10, %s8
  $region1: #{tpu_custom_call.1} parent=0
    #allocation2 [shape = 'u8[4096]{0}', space=vmem, size = 0x1000, scoped, tag = 'input window, operand 0, single buffered']
    #allocation3 [shape = 's32[1]{0}', space=sflag, size = 0x4, scoped, tag = 'scoped memory for tpu_custom_call.1']
    #allocation4 [shape = 's32[1]{0}', space=sflag, size = 0x4, scoped, tag = 'scoped memory for tpu_custom_call.1']
    #allocation5 [shape = 'u8[4096]{0}', space=vmem, size = 0x1000, scoped, tag = 'input window, operand 1, single buffered']
    #allocation6 [shape = 's32[1]{0}', space=sflag, size = 0x4, scoped, tag = 'scoped memory for tpu_custom_call.1']
    #allocation7 [shape = 'u8[65536]{0}', space=vmem, size = 0x10000, scoped, tag = 'input window, operand 3, single buffered']
    #allocation8 [shape = 'u8[32768]{0}', space=vmem, size = 0x8000, scoped, tag = 'input window, operand 5, single buffered']
    #allocation9 [shape = 's32[1]{0}', space=sflag, size = 0x4, scoped, tag = 'scoped memory for tpu_custom_call.1']
    #allocation10 [shape = 'u8[8192]{0}', space=vmem, size = 0x2000, scoped, tag = 'output window, operand 0, single buffered']
    %12 = vsyncpa [#allocation3], 0
    %13 = vsyncpa [#allocation6], 0
    %14 = vsyncpa [#allocation9], 0
    %15 = vsyncpa [#allocation4], 0
    // Predicated region
    $region2: #{tpu_custom_call.1} parent=1 // pred_check
      _
    $region3: #{tpu_custom_call.1} parent=1 // pred_check_branch
      %17 = sbr.rel (0) target = $region5
    $region4: #{tpu_custom_call.1} parent=1 // pred_region
      %s19 = ssub.s32 128, 16
      %20 = vsyncadd [#allocation3], %s19
      %s21 = sshll.u32 [#allocation2], 4
      %s22 = int_to_ptr.vmem [resolvable:$true] %s21
      %27 = dma.hbm_to_vmem [thread:$0]  %s0, 16, %s22, [#allocation3], 16, 16, 1
    $region5: #{tpu_custom_call.1} parent=1 // pred_fallthru
      _
    // Predicated region
    $region6: #{tpu_custom_call.1} parent=1 // pred_check
      _
    $region7: #{tpu_custom_call.1} parent=1 // pred_check_branch
      %29 = sbr.rel (0) target = $region9
    $region8: #{tpu_custom_call.1} parent=1 // pred_region
      %s31 = ssub.s32 128, 128
      %32 = vsyncadd [#allocation6], %s31
      %s33 = sshll.u32 [#allocation5], 4
      %s34 = int_to_ptr.vmem [resolvable:$true] %s33
      %39 = dma.hbm_to_vmem [thread:$0]  %s1, 128, %s34, [#allocation6], 64, 64, 4
    $region9: #{tpu_custom_call.1} parent=1 // pred_fallthru
      _
    // Predicated region
    $region10: #{tpu_custom_call.1} parent=1 // pred_check
      _
    $region11: #{tpu_custom_call.1} parent=1 // pred_check_branch
      %41 = sbr.rel (0) target = $region13
    $region12: #{tpu_custom_call.1} parent=1 // pred_region
      _
    $region13: #{tpu_custom_call.1} parent=1 // pred_fallthru
      _
    // Predicated region
    $region14: #{tpu_custom_call.1} parent=1 // pred_check
      _
    $region15: #{tpu_custom_call.1} parent=1 // pred_check_branch
      %43 = sbr.rel (0) target = $region17
    $region16: #{tpu_custom_call.1} parent=1 // pred_region
      %s45 = ssub.s32 2048, 2048
      %46 = vsyncadd [#allocation6], %s45
      %s47 = sshll.u32 [#allocation7], 4
      %s48 = int_to_ptr.vmem [resolvable:$true] %s47
      %53 = dma.hbm_to_vmem [thread:$0]  %s3, 2048, %s48, [#allocation6], 64, 64, 4
    $region17: #{tpu_custom_call.1} parent=1 // pred_fallthru
      _
    // Predicated region
    $region18: #{tpu_custom_call.1} parent=1 // pred_check
      _
    $region19: #{tpu_custom_call.1} parent=1 // pred_check_branch
      %55 = sbr.rel (0) target = $region21
    $region20: #{tpu_custom_call.1} parent=1 // pred_region
      _
    $region21: #{tpu_custom_call.1} parent=1 // pred_fallthru
      _
    // Predicated region
    $region22: #{tpu_custom_call.1} parent=1 // pred_check
      _
    $region23: #{tpu_custom_call.1} parent=1 // pred_check_branch
      %57 = sbr.rel (0) target = $region25
    $region24: #{tpu_custom_call.1} parent=1 // pred_region
      %s59 = ssub.s32 1024, 1024
      %60 = vsyncadd [#allocation9], %s59
      %s61 = sshll.u32 [#allocation8], 4
      %s62 = int_to_ptr.vmem [resolvable:$true] %s61
      %67 = dma.hbm_to_vmem [thread:$0]  %s5, 1024, %s62, [#allocation9], 64, 64, 4
    $region25: #{tpu_custom_call.1} parent=1 // pred_fallthru
      _
    // Predicated region
    $region26: #{tpu_custom_call.1} parent=1 // pred_check
      _
    $region27: #{tpu_custom_call.1} parent=1 // pred_check_branch
      %69 = sbr.rel (0) target = $region29
    $region28: #{tpu_custom_call.1} parent=1 // pred_region
      _
    $region29: #{tpu_custom_call.1} parent=1 // pred_fallthru
      _
    // Predicated region
    $region30: #{tpu_custom_call.1} parent=1 // pred_check
      _
    $region31: #{tpu_custom_call.1} parent=1 // pred_check_branch
      %71 = sbr.rel (0) target = $region33
    $region32: #{tpu_custom_call.1} parent=1 // pred_region
      %72 = dma.done [#allocation3], 128
    $region33: #{tpu_custom_call.1} parent=1 // pred_fallthru
      _
    // Predicated region
    $region34: #{tpu_custom_call.1} parent=1 // pred_check
      _
    $region35: #{tpu_custom_call.1} parent=1 // pred_check_branch
      %74 = sbr.rel (0) target = $region37
    $region36: #{tpu_custom_call.1} parent=1 // pred_region
      %75 = dma.done [#allocation6], 128
    $region37: #{tpu_custom_call.1} parent=1 // pred_fallthru
      _
    // Predicated region
    $region38: #{tpu_custom_call.1} parent=1 // pred_check
      _
    $region39: #{tpu_custom_call.1} parent=1 // pred_check_branch
      %77 = sbr.rel (0) target = $region41
    $region40: #{tpu_custom_call.1} parent=1 // pred_region
      %78 = dma.done [#allocation6], 2048
    $region41: #{tpu_custom_call.1} parent=1 // pred_fallthru
      _
    // Predicated region
    $region42: #{tpu_custom_call.1} parent=1 // pred_check
      _
    $region43: #{tpu_custom_call.1} parent=1 // pred_check_branch
      %80 = sbr.rel (0) target = $region45
    $region44: #{tpu_custom_call.1} parent=1 // pred_region
      %81 = dma.done [#allocation9], 1024
    $region45: #{tpu_custom_call.1} parent=1 // pred_fallthru
      _
    %v83 = vld [vmem:[#allocation2] sm:$0x1]
    %v84 = vld [vmem:[#allocation2 + $0x1] sm:$0x1]
    %v85 = vld [vmem:[#allocation2 + $0x2] sm:$0x1]
    %v86 = vld [vmem:[#allocation2 + $0x3] sm:$0x1]
    %v87 = vld [vmem:[#allocation2 + $0x4] sm:$0x1]
    %v88 = vld [vmem:[#allocation2 + $0x5] sm:$0x1]
    %v89 = vld [vmem:[#allocation2 + $0x6] sm:$0x1]
    %v90 = vld [vmem:[#allocation2 + $0x7] sm:$0x1]
    %v91 = vld [vmem:[#allocation5] sm:$0xf]
    %v92 = vld [vmem:[#allocation5 + $0x4] sm:$0xf]
    %v93 = vld [vmem:[%s2] sm:$0x1]
    %v95 = vlaneseq
    %v96 = vshrl.u32 %v95, 7
    %v97 = vsub.s32 0, %v96
    %v98 = vrot.slane %v93, %v97
    %v108 = vcombine.low %v83, %v84
    %v109 = vcombine.low %v85, %v86
    %v110 = vcombine.low %v87, %v88
    %v111 = vcombine.low %v89, %v90
    %v113 = vunpack.c.l.s4 1966171168
    %v114 = vunpack.c.0.s8 %v113
    %v115 = vlaneseq
    %v116 = vshrl.u32 %v115, 7
    %v117 = vsub.s32 %v114, %v116
    %v118 = vrot.slane %v108, %v117
    %v120 = vunpack.c.l.s4 1966171168
    %v121 = vunpack.c.0.s8 %v120
    %v122 = vlaneseq
    %v123 = vshrl.u32 %v122, 7
    %v124 = vsub.s32 %v121, %v123
    %v125 = vrot.slane %v109, %v124
    %v127 = vunpack.c.l.s4 1966171168
    %v128 = vunpack.c.0.s8 %v127
    %v129 = vlaneseq
    %v130 = vshrl.u32 %v129, 7
    %v131 = vsub.s32 %v128, %v130
    %v132 = vrot.slane %v110, %v131
    %v134 = vunpack.c.l.s4 1966171168
    %v135 = vunpack.c.0.s8 %v134
    %v136 = vlaneseq
    %v137 = vshrl.u32 %v136, 7
    %v138 = vsub.s32 %v135, %v137
    %v139 = vrot.slane %v111, %v138
    %v140 = vcombine.low %v118, %v125
    %v141 = vcombine.low %v132, %v139
    %v143 = vunpack.c.l.s4 1966171168
    %v144 = vunpack.c.0.s8 %v143
    %v145 = vlaneseq
    %v146 = vshrl.u32 %v145, 7
    %v147 = vsub.s32 %v144, %v146
    %v148 = vrot.slane %v140, %v147
    %v150 = vunpack.c.l.s4 1966171168
    %v151 = vunpack.c.0.s8 %v150
    %v152 = vlaneseq
    %v153 = vshrl.u32 %v152, 7
    %v154 = vsub.s32 %v151, %v153
    %v155 = vrot.slane %v141, %v154
    %v156 = vcombine.low %v148, %v155
    %v159 = vunpack.c.l.b16 %v91
    %v160 = vunpack.c.l.b16 %v92
    %v161 = vpack.c.b16 %v160, %v159
    %vm163 = vcmask 130048
    %v165 = vsel %vm163, %v156, 0
    %167 = vmatprep.subr.bf16.mxu0 0
    %168 = vmatpush1.bf16.msra.mxu0 0
    %169 = vmatprep.subr.bf16.mxu0 0
    %170 = vmatpush1.bf16.msra.mxu0 0
    %171 = vmatprep.subr.bf16.mxu0 0
    %172 = vmatpush1.bf16.msra.mxu0 0
    %173 = vmatprep.subr.bf16.mxu0 0
    %174 = vmatpush1.bf16.msra.mxu0 0
    %175 = vmatprep.subr.bf16.mxu0 0
    %176 = vmatpush1.bf16.msra.mxu0 0
    %177 = vmatprep.subr.bf16.mxu0 0
    %178 = vmatpush1.bf16.msra.mxu0 0
    %179 = vmatprep.subr.bf16.mxu0 0
    %180 = vmatpush1.bf16.msra.mxu0 0
    %181 = vmatprep.subr.bf16.mxu0 0
    %182 = vmatpush1.bf16.msra.mxu0 %v161
    %183 = vmatprep.subr.bf16.mxu0 0
    %184 = vmatpush2.bf16.msra.mxu0 0
    %185 = vmatprep.subr.bf16.mxu0 0
    %186 = vmatpush2.bf16.msra.mxu0 0
    %187 = vmatprep.subr.bf16.mxu0 0
    %188 = vmatpush2.bf16.msra.mxu0 0
    %189 = vmatprep.subr.bf16.mxu0 0
    %190 = vmatpush2.bf16.msra.mxu0 0
    %191 = vmatprep.subr.bf16.mxu0 0
    %192 = vmatpush2.bf16.msra.mxu0 0
    %193 = vmatprep.subr.bf16.mxu0 0
    %194 = vmatpush2.bf16.msra.mxu0 0
    %195 = vmatprep.subr.bf16.mxu0 0
    %196 = vmatpush2.bf16.msra.mxu0 0
    %197 = vmatprep.subr.bf16.mxu0 0
    %198 = vmatpush2.bf16.msra.mxu0 0
    %199 = vmatprep.mubr.bf16.mxu0 0
    %200 = vmatmul.mubr.bf16.gmra.mxu0 %v165
    %v201 = vpop.f32.mrf.mxu0
    %v202 = vadd.f32 %v98, %v201
    %v203 = vpop.f32.mrf.mxu0
    %v204 = vpop.f32.mrf.mxu0
    %v205 = vadd.f32 %v98, %v204
    %v206 = vpop.f32.mrf.mxu0
    %207 = vdwg.mxu0
    %v208 = vmax.f32 %v202, 0.0
    %v209 = vmax.f32 %v205, 0.0
    %v210 = vpack.c.bf16 %v209, %v208
    %v211 = vld [vmem:[#allocation7] sm:$0xf]
    %v212 = vld [vmem:[#allocation7 + $0x4] sm:$0xf]
    %v213 = vld [vmem:[#allocation7 + $0x8] sm:$0xf]
    %v214 = vld [vmem:[#allocation7 + $0xc] sm:$0xf]
    %v215 = vld [vmem:[#allocation7 + $0x10] sm:$0xf]
    %v216 = vld [vmem:[#allocation7 + $0x14] sm:$0xf]
    %v217 = vld [vmem:[#allocation7 + $0x18] sm:$0xf]
    %v218 = vld [vmem:[#allocation7 + $0x1c] sm:$0xf]
    %v219 = vld [vmem:[#allocation7 + $0x20] sm:$0xf]
    %v220 = vld [vmem:[#allocation7 + $0x24] sm:$0xf]
    %v221 = vld [vmem:[#allocation7 + $0x28] sm:$0xf]
    %v222 = vld [vmem:[#allocation7 + $0x2c] sm:$0xf]
    %v223 = vld [vmem:[#allocation7 + $0x30] sm:$0xf]
    %v224 = vld [vmem:[#allocation7 + $0x34] sm:$0xf]
    %v225 = vld [vmem:[#allocation7 + $0x38] sm:$0xf]
    %v226 = vld [vmem:[#allocation7 + $0x3c] sm:$0xf]
    %v227 = vld [vmem:[%s4] sm:$0x1]
    %v229 = vlaneseq
    %v230 = vshrl.u32 %v229, 7
    %v231 = vsub.s32 0, %v230
    %v232 = vrot.slane %v227, %v231
    %v250 = vunpack.c.l.b16 %v211
    %v251 = vunpack.c.l.b16 %v212
    %v252 = vunpack.c.l.b16 %v213
    %v253 = vunpack.c.l.b16 %v214
    %v254 = vunpack.c.l.b16 %v215
    %v255 = vunpack.c.l.b16 %v216
    %v256 = vunpack.c.l.b16 %v217
    %v257 = vunpack.c.l.b16 %v218
    %v258 = vunpack.c.l.b16 %v219
    %v259 = vunpack.c.l.b16 %v220
    %v260 = vunpack.c.l.b16 %v221
    %v261 = vunpack.c.l.b16 %v222
    %v262 = vunpack.c.l.b16 %v223
    %v263 = vunpack.c.l.b16 %v224
    %v264 = vunpack.c.l.b16 %v225
    %v265 = vunpack.c.l.b16 %v226
    %v266 = vpack.c.b16 %v251, %v250
    %v267 = vpack.c.b16 %v253, %v252
    %v268 = vpack.c.b16 %v255, %v254
    %v269 = vpack.c.b16 %v257, %v256
    %v270 = vpack.c.b16 %v259, %v258
    %v271 = vpack.c.b16 %v261, %v260
    %v272 = vpack.c.b16 %v263, %v262
    %v273 = vpack.c.b16 %v265, %v264
    %282 = vmatprep.subr.bf16.mxu0 0
    %283 = vmatpush1.bf16.msra.mxu0 %v273
    %284 = vmatprep.subr.bf16.mxu0 0
    %285 = vmatpush1.bf16.msra.mxu0 %v272
    %286 = vmatprep.subr.bf16.mxu0 0
    %287 = vmatpush1.bf16.msra.mxu0 %v271
    %288 = vmatprep.subr.bf16.mxu0 0
    %289 = vmatpush1.bf16.msra.mxu0 %v270
    %290 = vmatprep.subr.bf16.mxu0 0
    %291 = vmatpush1.bf16.msra.mxu0 %v269
    %292 = vmatprep.subr.bf16.mxu0 0
    %293 = vmatpush1.bf16.msra.mxu0 %v268
    %294 = vmatprep.subr.bf16.mxu0 0
    %295 = vmatpush1.bf16.msra.mxu0 %v267
    %296 = vmatprep.subr.bf16.mxu0 0
    %297 = vmatpush1.bf16.msra.mxu0 %v266
    %298 = vmatprep.subr.bf16.mxu0 0
    %299 = vmatpush2.bf16.msra.mxu0 0
    %300 = vmatprep.subr.bf16.mxu0 0
    %301 = vmatpush2.bf16.msra.mxu0 0
    %302 = vmatprep.subr.bf16.mxu0 0
    %303 = vmatpush2.bf16.msra.mxu0 0
    %304 = vmatprep.subr.bf16.mxu0 0
    %305 = vmatpush2.bf16.msra.mxu0 0
    %306 = vmatprep.subr.bf16.mxu0 0
    %307 = vmatpush2.bf16.msra.mxu0 0
    %308 = vmatprep.subr.bf16.mxu0 0
    %309 = vmatpush2.bf16.msra.mxu0 0
    %310 = vmatprep.subr.bf16.mxu0 0
    %311 = vmatpush2.bf16.msra.mxu0 0
    %312 = vmatprep.subr.bf16.mxu0 0
    %313 = vmatpush2.bf16.msra.mxu0 0
    %314 = vmatprep.mubr.bf16.mxu0 0
    %315 = vmatmul.mubr.bf16.gmra.mxu0 %v210
    %v316 = vpop.f32.mrf.mxu0
    %v317 = vadd.f32 %v232, %v316
    %v318 = vpop.f32.mrf.mxu0
    %v319 = vpop.f32.mrf.mxu0
    %v320 = vadd.f32 %v232, %v319
    %v321 = vpop.f32.mrf.mxu0
    %322 = vdwg.mxu0
    %v323 = vmax.f32 %v317, 0.0
    %v324 = vmax.f32 %v320, 0.0
    %v325 = vpack.c.bf16 %v324, %v323
    %s326 = scalar_lea.vmem [#allocation7], 64
    %v327 = vld [vmem:[%s326] sm:$0xf]
    %v328 = vld [vmem:[%s326 + $0x4] sm:$0xf]
    %v329 = vld [vmem:[%s326 + $0x8] sm:$0xf]
    %v330 = vld [vmem:[%s326 + $0xc] sm:$0xf]
    %v331 = vld [vmem:[%s326 + $0x10] sm:$0xf]
    %v332 = vld [vmem:[%s326 + $0x14] sm:$0xf]
    %v333 = vld [vmem:[%s326 + $0x18] sm:$0xf]
    %v334 = vld [vmem:[%s326 + $0x1c] sm:$0xf]
    %v335 = vld [vmem:[%s326 + $0x20] sm:$0xf]
    %v336 = vld [vmem:[%s326 + $0x24] sm:$0xf]
    %v337 = vld [vmem:[%s326 + $0x28] sm:$0xf]
    %v338 = vld [vmem:[%s326 + $0x2c] sm:$0xf]
    %v339 = vld [vmem:[%s326 + $0x30] sm:$0xf]
    %v340 = vld [vmem:[%s326 + $0x34] sm:$0xf]
    %v341 = vld [vmem:[%s326 + $0x38] sm:$0xf]
    %v342 = vld [vmem:[%s326 + $0x3c] sm:$0xf]
    %s343 = scalar_lea.vmem %s4, 1
    %v344 = vld [vmem:[%s343] sm:$0x1]
    %v346 = vlaneseq
    %v347 = vshrl.u32 %v346, 7
    %v348 = vsub.s32 0, %v347
    %v349 = vrot.slane %v344, %v348
    %v367 = vunpack.c.l.b16 %v327
    %v368 = vunpack.c.l.b16 %v328
    %v369 = vunpack.c.l.b16 %v329
    %v370 = vunpack.c.l.b16 %v330
    %v371 = vunpack.c.l.b16 %v331
    %v372 = vunpack.c.l.b16 %v332
    %v373 = vunpack.c.l.b16 %v333
    %v374 = vunpack.c.l.b16 %v334
    %v375 = vunpack.c.l.b16 %v335
    %v376 = vunpack.c.l.b16 %v336
    %v377 = vunpack.c.l.b16 %v337
    %v378 = vunpack.c.l.b16 %v338
    %v379 = vunpack.c.l.b16 %v339
    %v380 = vunpack.c.l.b16 %v340
    %v381 = vunpack.c.l.b16 %v341
    %v382 = vunpack.c.l.b16 %v342
    %v383 = vpack.c.b16 %v368, %v367
    %v384 = vpack.c.b16 %v370, %v369
    %v385 = vpack.c.b16 %v372, %v371
    %v386 = vpack.c.b16 %v374, %v373
    %v387 = vpack.c.b16 %v376, %v375
    %v388 = vpack.c.b16 %v378, %v377
    %v389 = vpack.c.b16 %v380, %v379
    %v390 = vpack.c.b16 %v382, %v381
    %399 = vmatprep.subr.bf16.mxu0 0
    %400 = vmatpush1.bf16.msra.mxu0 %v390
    %401 = vmatprep.subr.bf16.mxu0 0
    %402 = vmatpush1.bf16.msra.mxu0 %v389
    %403 = vmatprep.subr.bf16.mxu0 0
    %404 = vmatpush1.bf16.msra.mxu0 %v388
    %405 = vmatprep.subr.bf16.mxu0 0
    %406 = vmatpush1.bf16.msra.mxu0 %v387
    %407 = vmatprep.subr.bf16.mxu0 0
    %408 = vmatpush1.bf16.msra.mxu0 %v386
    %409 = vmatprep.subr.bf16.mxu0 0
    %410 = vmatpush1.bf16.msra.mxu0 %v385
    %411 = vmatprep.subr.bf16.mxu0 0
    %412 = vmatpush1.bf16.msra.mxu0 %v384
    %413 = vmatprep.subr.bf16.mxu0 0
    %414 = vmatpush1.bf16.msra.mxu0 %v383
    %415 = vmatprep.subr.bf16.mxu0 0
    %416 = vmatpush2.bf16.msra.mxu0 0
    %417 = vmatprep.subr.bf16.mxu0 0
    %418 = vmatpush2.bf16.msra.mxu0 0
    %419 = vmatprep.subr.bf16.mxu0 0
    %420 = vmatpush2.bf16.msra.mxu0 0
    %421 = vmatprep.subr.bf16.mxu0 0
    %422 = vmatpush2.bf16.msra.mxu0 0
    %423 = vmatprep.subr.bf16.mxu0 0
    %424 = vmatpush2.bf16.msra.mxu0 0
    %425 = vmatprep.subr.bf16.mxu0 0
    %426 = vmatpush2.bf16.msra.mxu0 0
    %427 = vmatprep.subr.bf16.mxu0 0
    %428 = vmatpush2.bf16.msra.mxu0 0
    %429 = vmatprep.subr.bf16.mxu0 0
    %430 = vmatpush2.bf16.msra.mxu0 0
    %431 = vmatprep.mubr.bf16.mxu0 0
    %432 = vmatmul.mubr.bf16.gmra.mxu0 %v325
    %v433 = vpop.f32.mrf.mxu0
    %v434 = vadd.f32 %v349, %v433
    %v435 = vpop.f32.mrf.mxu0
    %v436 = vpop.f32.mrf.mxu0
    %v437 = vadd.f32 %v349, %v436
    %v438 = vpop.f32.mrf.mxu0
    %439 = vdwg.mxu0
    %v440 = vmax.f32 %v434, 0.0
    %v441 = vmax.f32 %v437, 0.0
    %v442 = vpack.c.bf16 %v441, %v440
    %v443 = vld [vmem:[#allocation8] sm:$0xf]
    %v444 = vld [vmem:[#allocation8 + $0x4] sm:$0xf]
    %v445 = vld [vmem:[#allocation8 + $0x8] sm:$0xf]
    %v446 = vld [vmem:[#allocation8 + $0xc] sm:$0xf]
    %v447 = vld [vmem:[#allocation8 + $0x10] sm:$0xf]
    %v448 = vld [vmem:[#allocation8 + $0x14] sm:$0xf]
    %v449 = vld [vmem:[#allocation8 + $0x18] sm:$0xf]
    %v450 = vld [vmem:[#allocation8 + $0x1c] sm:$0xf]
    %v451 = vld [vmem:[#allocation8 + $0x20] sm:$0xf]
    %v452 = vld [vmem:[#allocation8 + $0x24] sm:$0xf]
    %v453 = vld [vmem:[#allocation8 + $0x28] sm:$0xf]
    %v454 = vld [vmem:[#allocation8 + $0x2c] sm:$0xf]
    %v455 = vld [vmem:[#allocation8 + $0x30] sm:$0xf]
    %v456 = vld [vmem:[#allocation8 + $0x34] sm:$0xf]
    %v457 = vld [vmem:[#allocation8 + $0x38] sm:$0xf]
    %v458 = vld [vmem:[#allocation8 + $0x3c] sm:$0xf]
    %v459 = vld [vmem:[%s6] sm:$0x1]
    %v461 = vlaneseq
    %v462 = vshrl.u32 %v461, 7
    %v463 = vsub.s32 0, %v462
    %v464 = vrot.slane %v459, %v463
    %v482 = vunpack.c.l.b16 %v443
    %v483 = vunpack.c.l.b16 %v444
    %v484 = vunpack.c.l.b16 %v445
    %v485 = vunpack.c.l.b16 %v446
    %v486 = vunpack.c.l.b16 %v447
    %v487 = vunpack.c.l.b16 %v448
    %v488 = vunpack.c.l.b16 %v449
    %v489 = vunpack.c.l.b16 %v450
    %v490 = vunpack.c.l.b16 %v451
    %v491 = vunpack.c.l.b16 %v452
    %v492 = vunpack.c.l.b16 %v453
    %v493 = vunpack.c.l.b16 %v454
    %v494 = vunpack.c.l.b16 %v455
    %v495 = vunpack.c.l.b16 %v456
    %v496 = vunpack.c.l.b16 %v457
    %v497 = vunpack.c.l.b16 %v458
    %v498 = vpack.c.b16 %v483, %v482
    %v499 = vpack.c.b16 %v485, %v484
    %v500 = vpack.c.b16 %v487, %v486
    %v501 = vpack.c.b16 %v489, %v488
    %v502 = vpack.c.b16 %v491, %v490
    %v503 = vpack.c.b16 %v493, %v492
    %v504 = vpack.c.b16 %v495, %v494
    %v505 = vpack.c.b16 %v497, %v496
    %514 = vmatprep.subr.bf16.mxu0 0
    %515 = vmatpush1.bf16.msra.mxu0 %v505
    %516 = vmatprep.subr.bf16.mxu0 0
    %517 = vmatpush1.bf16.msra.mxu0 %v504
    %518 = vmatprep.subr.bf16.mxu0 0
    %519 = vmatpush1.bf16.msra.mxu0 %v503
    %520 = vmatprep.subr.bf16.mxu0 0
    %521 = vmatpush1.bf16.msra.mxu0 %v502
    %522 = vmatprep.subr.bf16.mxu0 0
    %523 = vmatpush1.bf16.msra.mxu0 %v501
    %524 = vmatprep.subr.bf16.mxu0 0
    %525 = vmatpush1.bf16.msra.mxu0 %v500
    %526 = vmatprep.subr.bf16.mxu0 0
    %527 = vmatpush1.bf16.msra.mxu0 %v499
    %528 = vmatprep.subr.bf16.mxu0 0
    %529 = vmatpush1.bf16.msra.mxu0 %v498
    %530 = vmatprep.subr.bf16.mxu0 0
    %531 = vmatpush2.bf16.msra.mxu0 0
    %532 = vmatprep.subr.bf16.mxu0 0
    %533 = vmatpush2.bf16.msra.mxu0 0
    %534 = vmatprep.subr.bf16.mxu0 0
    %535 = vmatpush2.bf16.msra.mxu0 0
    %536 = vmatprep.subr.bf16.mxu0 0
    %537 = vmatpush2.bf16.msra.mxu0 0
    %538 = vmatprep.subr.bf16.mxu0 0
    %539 = vmatpush2.bf16.msra.mxu0 0
    %540 = vmatprep.subr.bf16.mxu0 0
    %541 = vmatpush2.bf16.msra.mxu0 0
    %542 = vmatprep.subr.bf16.mxu0 0
    %543 = vmatpush2.bf16.msra.mxu0 0
    %544 = vmatprep.subr.bf16.mxu0 0
    %545 = vmatpush2.bf16.msra.mxu0 0
    %546 = vmatprep.mubr.bf16.mxu0 0
    %547 = vmatmul.mubr.bf16.gmra.mxu0 %v442
    %v548 = vpop.f32.mrf.mxu0
    %v549 = vadd.f32 %v464, %v548
    %v550 = vpop.f32.mrf.mxu0
    %v551 = vpop.f32.mrf.mxu0
    %v552 = vadd.f32 %v464, %v551
    %v553 = vpop.f32.mrf.mxu0
    %554 = vdwg.mxu0
    %555 = vst [vmem:[#allocation10] sm:$0xff] %v549
    %556 = vst [vmem:[#allocation10 + $0x8] sm:$0xff] %v552
    // Predicated region
    $region46: #{tpu_custom_call.1} parent=1 // pred_check
      _
    $region47: #{tpu_custom_call.1} parent=1 // pred_check_branch
      %558 = sbr.rel (0) target = $region49
    $region48: #{tpu_custom_call.1} parent=1 // pred_region
      %s560 = ssub.s32 256, 32
      %561 = vsyncadd [#allocation4], %s560
      %s562 = sshll.u32 [#allocation10], 4
      %s563 = int_to_ptr.vmem [resolvable:$true] %s562
      %568 = dma.vmem_to_hbm [thread:$0]  %s563, 32, %s7, [#allocation4], 32, 32, 2
    $region49: #{tpu_custom_call.1} parent=1 // pred_fallthru
      _
    // Predicated region
    $region50: #{tpu_custom_call.1} parent=1 // pred_check
      _
    $region51: #{tpu_custom_call.1} parent=1 // pred_check_branch
      %570 = sbr.rel (0) target = $region53
    $region52: #{tpu_custom_call.1} parent=1 // pred_region
      %571 = dma.done [#allocation4], 256
    $region53: #{tpu_custom_call.1} parent=1 // pred_fallthru
      _
    %572 = vsyncpa [#allocation3], 1
    %573 = vsyncpa [#allocation6], 1
    %574 = vsyncpa [#allocation9], 1
    %575 = vsyncpa [#allocation4], 1

</llo_original>
